<compile_context>
chip_gen: v7x
topology: tpu7x:2x2x1
jax: 0.10.0
libtpu: 0.0.40
codegen_flags: <defaults>
</compile_context>

<pallas_src>
import jax
import jax.numpy as jnp
from jax.experimental import pallas as pl
from jax.experimental.pallas import tpu as pltpu


def _cat_cls_kernel(c1_ref, c2_ref, c3_ref, c4_ref, o_ref):
    # cK_ref: (TB, H)   CLS row of hidden layer -K, native dtype
    # o_ref : (TB, 4*H) concatenated CLS embedding, native dtype
    o_ref[...] = jnp.concatenate(
        [c1_ref[...], c2_ref[...], c3_ref[...], c4_ref[...]], axis=-1
    )


def hidden_cat_cls_emb(hidden_states, *, block_b=None):
    """Concat CLS embeddings of the last 4 hidden states.

    hidden_states: sequence (tuple/list) of arrays, each (B, S, H), same dtype.
    returns: (B, 4*H) array with the same dtype as the inputs.
    """
    # Layers in the order the reference concatenates: [-1, -2, -3, -4].
    layers = [hidden_states[-idx] for idx in range(1, 5)]
    B, S, H = layers[0].shape
    dtype = layers[0].dtype

    # Layout plumbing: pull only the CLS row of each layer.  This reads just
    # B*H elements per layer from HBM (not the full B*S*H hidden state) and
    # gives the kernel clean, lane-dense 2-D inputs.
    cls_rows = [h[:, 0, :] for h in layers]  # each (B, H), native dtype

    # Batch tile: largest "nice" divisor of B (falls back to the full batch
    # for tiny B, keeping block dims equal to the full array dims).
    if block_b is None:
        block_b = B
        for cand in (1024, 512, 256, 128, 64, 32, 16, 8):
            if B >= cand and B % cand == 0:
                block_b = cand
                break
    grid = (B // block_b,)

    in_spec = pl.BlockSpec((block_b, H), lambda b: (b, 0))
    out_spec = pl.BlockSpec((block_b, 4 * H), lambda b: (b, 0))

    return pl.pallas_call(
        _cat_cls_kernel,
        out_shape=jax.ShapeDtypeStruct((B, 4 * H), dtype),
        grid=grid,
        in_specs=[in_spec, in_spec, in_spec, in_spec],
        out_specs=out_spec,
        compiler_params=pltpu.CompilerParams(
            dimension_semantics=("parallel",),
        ),
    )(*cls_rows)


if __name__ == "__main__":
    # Small shapes implied by the forward: L=6 hidden-state layers,
    # batch=2, seq=8, hidden=32  ->  output (2, 128).
    B, S, H, L = 2, 8, 32, 6
    key = jax.random.PRNGKey(0)
    keys = jax.random.split(key, L)
    hidden_states = tuple(
        jax.random.normal(k, (B, S, H), dtype=jnp.float32) for k in keys
    )

    result = hidden_cat_cls_emb(hidden_states)
    jax.block_until_ready(result)

    # Pure-JAX reference (mirrors the PyTorch forward exactly).
    all_h = jnp.stack(hidden_states)                                      # (L, B, S, H)
    cat_pool = jnp.concatenate([all_h[-idx] for idx in range(1, 5)], axis=-1)
    ref = cat_pool[:, 0]                                                  # (B, 4*H)

    assert result.shape == (B, 4 * H)
    assert result.dtype == hidden_states[0].dtype
    assert jnp.array_equal(result, ref), "mismatch vs reference"

    print("KERNEL_OK")
</pallas_src>

<mosaic_0001>
module attributes {stable_mosaic.version = 11 : i64} {
  func.func @_cat_cls_kernel(%arg0: i32, %arg1: memref<2x32xf32, #tpu.memory_space<vmem>>, %arg2: memref<2x32xf32, #tpu.memory_space<vmem>>, %arg3: memref<2x32xf32, #tpu.memory_space<vmem>>, %arg4: memref<2x32xf32, #tpu.memory_space<vmem>>, %arg5: memref<2x128xf32, #tpu.memory_space<vmem>>) attributes {dimension_semantics = [#tpu.dimension_semantics<parallel>], iteration_bounds = array<i64: 1>, scalar_prefetch = 0 : i64, scratch_operands = 0 : i64, tpu.core_type = #tpu.core_type<tc>, window_params = [{transform_indices = @transform_0, window_bounds = array<i64: 2, 32>}, {transform_indices = @transform_1, window_bounds = array<i64: 2, 32>}, {transform_indices = @transform_2, window_bounds = array<i64: 2, 32>}, {transform_indices = @transform_3, window_bounds = array<i64: 2, 32>}, {transform_indices = @transform_4, window_bounds = array<i64: 2, 128>}]} {
    %c0 = arith.constant 0 : index
    %c0_0 = arith.constant 0 : index
    %0 = vector.load %arg1[%c0, %c0_0] : memref<2x32xf32, #tpu.memory_space<vmem>>, vector<2x32xf32>
    %c0_1 = arith.constant 0 : index
    %c0_2 = arith.constant 0 : index
    %1 = vector.load %arg2[%c0_1, %c0_2] : memref<2x32xf32, #tpu.memory_space<vmem>>, vector<2x32xf32>
    %c0_3 = arith.constant 0 : index
    %c0_4 = arith.constant 0 : index
    %2 = vector.load %arg3[%c0_3, %c0_4] : memref<2x32xf32, #tpu.memory_space<vmem>>, vector<2x32xf32>
    %c0_5 = arith.constant 0 : index
    %c0_6 = arith.constant 0 : index
    %3 = vector.load %arg4[%c0_5, %c0_6] : memref<2x32xf32, #tpu.memory_space<vmem>>, vector<2x32xf32>
    %4 = tpu.concatenate %0, %1, %2, %3 in 1 : vector<2x32xf32>, vector<2x32xf32>, vector<2x32xf32>, vector<2x32xf32> -> vector<2x128xf32>
    %c0_7 = arith.constant 0 : index
    %c0_8 = arith.constant 0 : index
    %5 = vector.load %arg5[%c0_7, %c0_8] : memref<2x128xf32, #tpu.memory_space<vmem>>, vector<2x128xf32>
    tpu.vector_store %arg5[%c0_7, %c0_8], %4 {strides = array<i32>} : memref<2x128xf32, #tpu.memory_space<vmem>>, vector<2x128xf32>,
    return
  }
  func.func @transform_0(%arg0: i32) -> (i32, i32) {
    %c0_i32 = arith.constant 0 : i32
    %c0_i32_0 = arith.constant 0 : i32
    return %arg0, %c0_i32 : i32, i32
  }
  func.func @transform_1(%arg0: i32) -> (i32, i32) {
    %c0_i32 = arith.constant 0 : i32
    %c0_i32_0 = arith.constant 0 : i32
    return %arg0, %c0_i32 : i32, i32
  }
  func.func @transform_2(%arg0: i32) -> (i32, i32) {
    %c0_i32 = arith.constant 0 : i32
    %c0_i32_0 = arith.constant 0 : i32
    return %arg0, %c0_i32 : i32, i32
  }
  func.func @transform_3(%arg0: i32) -> (i32, i32) {
    %c0_i32 = arith.constant 0 : i32
    %c0_i32_0 = arith.constant 0 : i32
    return %arg0, %c0_i32 : i32, i32
  }
  func.func @transform_4(%arg0: i32) -> (i32, i32) {
    %c0_i32 = arith.constant 0 : i32
    %c0_i32_0 = arith.constant 0 : i32
    return %arg0, %c0_i32 : i32, i32
  }
}

</mosaic_0001>

<llo_original>
// kernel: tpu_custom_call.1
$region0: #{tpu_custom_call.1}
  #allocation0 [shape = 'u32[]', space=smem, size = 0x4, offset = 0x4, fixed_abs, tag = 'smem constant byte address 0x4 - core index']
  #allocation1 [shape = 'u32[144,128]{1,0:T(1,128)}', space=vmem, size = 0x12000, scoped, tag = 'internal scratch']
  %s0 = inlined_call_operand.hbm [shape: f32[2,32], index: 0, kind: input, shape index: {}]
  %s1 = inlined_call_operand.vmem [shape: f32[2,32], index: 1, kind: input, shape index: {}]
  %s2 = inlined_call_operand.vmem [shape: f32[2,32], index: 2, kind: input, shape index: {}]
  %s3 = inlined_call_operand.vmem [shape: f32[2,32], index: 3, kind: input, shape index: {}]
  %s4 = inlined_call_operand.hbm [shape: f32[2,128], index: 4, kind: output, shape index: {}]
  %s5 = sld [smem:[#allocation0]]
  $region30: #{tpu_custom_call.1} parent=0
    _
  %s7 = ssub.s32 1, %s5
  %s8 = scalar_select 0, %s7, %s5
  $region1: #{tpu_custom_call.1} parent=0
    #allocation2 [shape = 'u8[1024]{0}', space=vmem, size = 0x400, scoped, tag = 'input window, operand 0, single buffered']
    #allocation3 [shape = 's32[1]{0}', space=sflag, size = 0x4, scoped, tag = 'scoped memory for tpu_custom_call.1']
    #allocation4 [shape = 's32[1]{0}', space=sflag, size = 0x4, scoped, tag = 'scoped memory for tpu_custom_call.1']
    #allocation5 [shape = 'u8[1024]{0}', space=vmem, size = 0x400, scoped, tag = 'output window, operand 0, single buffered']
    %9 = vsyncpa [#allocation3], 0
    %10 = vsyncpa [#allocation4], 0
    // Predicated region
    $region2: #{tpu_custom_call.1} parent=1 // pred_check
      _
    $region3: #{tpu_custom_call.1} parent=1 // pred_check_branch
      %12 = sbr.rel (0) target = $region5
    $region4: #{tpu_custom_call.1} parent=1 // pred_region
      %s14 = ssub.s32 32, 32
      %15 = vsyncadd [#allocation3], %s14
      %s17 = sshll.u32 [#allocation2], 4
      %s18 = int_to_ptr.vmem [resolvable:$true] %s17
      %20 = dma.hbm_to_vmem [thread:$0]  %s0, 32, %s18, [#allocation3]
    $region5: #{tpu_custom_call.1} parent=1 // pred_fallthru
      _
    // Predicated region
    $region6: #{tpu_custom_call.1} parent=1 // pred_check
      _
    $region7: #{tpu_custom_call.1} parent=1 // pred_check_branch
      %22 = sbr.rel (0) target = $region9
    $region8: #{tpu_custom_call.1} parent=1 // pred_region
      _
    $region9: #{tpu_custom_call.1} parent=1 // pred_fallthru
      _
    // Predicated region
    $region10: #{tpu_custom_call.1} parent=1 // pred_check
      _
    $region11: #{tpu_custom_call.1} parent=1 // pred_check_branch
      %24 = sbr.rel (0) target = $region13
    $region12: #{tpu_custom_call.1} parent=1 // pred_region
      _
    $region13: #{tpu_custom_call.1} parent=1 // pred_fallthru
      _
    // Predicated region
    $region14: #{tpu_custom_call.1} parent=1 // pred_check
      _
    $region15: #{tpu_custom_call.1} parent=1 // pred_check_branch
      %26 = sbr.rel (0) target = $region17
    $region16: #{tpu_custom_call.1} parent=1 // pred_region
      _
    $region17: #{tpu_custom_call.1} parent=1 // pred_fallthru
      _
    // Predicated region
    $region18: #{tpu_custom_call.1} parent=1 // pred_check
      _
    $region19: #{tpu_custom_call.1} parent=1 // pred_check_branch
      %28 = sbr.rel (0) target = $region21
    $region20: #{tpu_custom_call.1} parent=1 // pred_region
      %29 = dma.done [#allocation3], 32
    $region21: #{tpu_custom_call.1} parent=1 // pred_fallthru
      _
    %v30 = vld [vmem:[#allocation2] sm:$0x3]
    %v31 = vld [vmem:[%s1] sm:$0x3]
    %v32 = vld [vmem:[%s2] sm:$0x3]
    %v33 = vld [vmem:[%s3] sm:$0x3]
    %35 = vrot.lane.b32.xlu0 %v31, 32
    %v36 = vpop.permute.xlu0 %35
    %39 = vrot.lane.b32.xlu0 %v32, 64
    %v40 = vpop.permute.xlu0 %39
    %43 = vrot.lane.b32.xlu0 %v33, 96
    %v44 = vpop.permute.xlu0 %43
    %vm46 = vcmask 261120
    %v47 = vsel %vm46, %v30, %v36
    %vm48 = vcmask 523264
    %v49 = vsel %vm48, %v47, %v40
    %vm50 = vcmask 785408
    %v51 = vsel %vm50, %v49, %v44
    %52 = vst [vmem:[#allocation5] sm:$0x3] %v51
    // Predicated region
    $region22: #{tpu_custom_call.1} parent=1 // pred_check
      _
    $region23: #{tpu_custom_call.1} parent=1 // pred_check_branch
      %54 = sbr.rel (0) target = $region25
    $region24: #{tpu_custom_call.1} parent=1 // pred_region
      %s56 = ssub.s32 32, 32
      %57 = vsyncadd [#allocation4], %s56
      %s59 = sshll.u32 [#allocation5], 4
      %s60 = int_to_ptr.vmem [resolvable:$true] %s59
      %62 = dma.vmem_to_hbm [thread:$0]  %s60, 32, %s4, [#allocation4]
    $region25: #{tpu_custom_call.1} parent=1 // pred_fallthru
      _
    // Predicated region
    $region26: #{tpu_custom_call.1} parent=1 // pred_check
      _
    $region27: #{tpu_custom_call.1} parent=1 // pred_check_branch
      %64 = sbr.rel (0) target = $region29
    $region28: #{tpu_custom_call.1} parent=1 // pred_region
      %65 = dma.done [#allocation4], 32
    $region29: #{tpu_custom_call.1} parent=1 // pred_fallthru
      _
    %66 = vsyncpa [#allocation3], 1
    %67 = vsyncpa [#allocation4], 1

</llo_original>
